<compile_context>
chip_gen: v6e
topology: v6e:2x2x1
jax: 0.10.0
libtpu: 0.0.40
codegen_flags: <defaults>
</compile_context>

<pallas_src>
import functools
import math

import jax
import jax.numpy as jnp
from jax.experimental import pallas as pl
from jax.experimental.pallas import tpu as pltpu

_I32_MAX = jnp.iinfo(jnp.int32).max   #  0x7FFFFFFF
_I32_MIN = jnp.iinfo(jnp.int32).min   # -0x80000000


def _topk_kernel(x_ref, vals_ref, idx_ref, *, k: int, k_pad: int):
    """Iterative top-k selection over the last axis of the (tile_m, N) block."""
    x = x_ref[...].astype(jnp.float32)          # exact for bf16/f16/f32 inputs
    tile_m, n = x.shape

    # Monotone signed-int32 key: order(key) == IEEE order(value), with NaN
    # forced above +inf (torch.topk treats NaN as the largest element).
    bits = pltpu.bitcast(x, jnp.int32)
    key = jnp.where(bits >= 0, bits, bits ^ jnp.int32(_I32_MAX))
    key = jnp.where(jnp.isnan(x), jnp.int32(_I32_MAX), key)

    lane = jax.lax.broadcasted_iota(jnp.int32, (tile_m, n), 1)
    sentinel = jnp.int32(_I32_MIN)   # strictly below every real key, incl. -inf

    key_cols = []
    idx_cols = []
    for _ in range(k):                                         # k is small; unrolled
        m = jnp.max(key, axis=-1, keepdims=True)               # (tile_m, 1)
        cand = jnp.where(key == m, lane, jnp.int32(n))
        arg = jnp.min(cand, axis=-1, keepdims=True)            # first occurrence
        key_cols.append(m)
        idx_cols.append(arg)
        key = jnp.where(cand == arg, sentinel, key)            # knock out winner

    if k_pad > k:                                              # lane-dense pad
        key_cols.append(jnp.zeros((tile_m, k_pad - k), jnp.int32))
        idx_cols.append(jnp.zeros((tile_m, k_pad - k), jnp.int32))
    keys = jnp.concatenate(key_cols, axis=-1)                  # (tile_m, k_pad)
    idxs = jnp.concatenate(idx_cols, axis=-1)

    # Invert the key transform (it is an involution) to recover float values.
    vbits = jnp.where(keys >= 0, keys, keys ^ jnp.int32(_I32_MAX))
    vals = pltpu.bitcast(vbits, jnp.float32).astype(vals_ref.dtype)

    vals_ref[...] = vals
    idx_ref[...] = idxs


def _round_up(v: int, m: int) -> int:
    return ((v + m - 1) // m) * m


def _sublane_multiple(dtype) -> int:
    return {4: 8, 2: 16, 1: 32}.get(jnp.dtype(dtype).itemsize, 8)


def _choose_tile_m(m: int, n: int, itemsize: int, k_pad: int, sub: int) -> int:
    # VMEM model per tile row: double-buffered input block + ~8 block-sized
    # int32/f32 intermediates (upcast/bits/key/iota/cand/masks) + output bufs.
    per_row = 2 * n * itemsize + 8 * 4 * n + 2 * 2 * k_pad * 8
    budget = 32 * 1024 * 1024          # stay well under the 48 MiB scoped limit
    tile = max(sub, (budget // per_row) // sub * sub)
    tile = min(tile, 1024)
    m_ceil = _round_up(m, sub)
    if m_ceil >= 2 * sub:              # keep >=2 grid steps (megacore / pipelining)
        tile = min(tile, _round_up(m_ceil // 2, sub))
    return max(sub, min(tile, m_ceil))


def straight_through_topk(x: jax.Array, k: int, *, tile_m=None):
    """Forward of StraightThroughTopK: top-k (values, indices) along last dim."""
    # TODO(synk): backward (sigmoid straight-through gradient) not implemented;
    # this is the forward pass only. Indices are int32, not torch's int64.
    orig_shape = x.shape
    n = int(orig_shape[-1])
    if not (0 < k <= n):
        raise ValueError(f"k={k} must satisfy 0 < k <= {n}")

    m = math.prod(orig_shape[:-1]) if len(orig_shape) > 1 else 1
    x2d = x.reshape(m, n)

    sub = _sublane_multiple(x.dtype)
    k_pad = _round_up(k, 128)          # lane-dense output width
    if tile_m is None:
        tile_m = _choose_tile_m(m, n, jnp.dtype(x.dtype).itemsize, k_pad, sub)
    tile_m = max(sub, _round_up(int(tile_m), sub))

    m_pad = _round_up(m, tile_m)
    if m_pad != m:
        x2d = jnp.pad(x2d, ((0, m_pad - m), (0, 0)))

    grid = (m_pad // tile_m,)
    vals, idxs = pl.pallas_call(
        functools.partial(_topk_kernel, k=k, k_pad=k_pad),
        out_shape=(
            jax.ShapeDtypeStruct((m_pad, k_pad), x.dtype),
            jax.ShapeDtypeStruct((m_pad, k_pad), jnp.int32),
        ),
        grid_spec=pltpu.PrefetchScalarGridSpec(
            num_scalar_prefetch=0,
            grid=grid,
            in_specs=[pl.BlockSpec((tile_m, n), lambda i: (i, 0))],
            out_specs=(
                pl.BlockSpec((tile_m, k_pad), lambda i: (i, 0)),
                pl.BlockSpec((tile_m, k_pad), lambda i: (i, 0)),
            ),
        ),
        compiler_params=pltpu.CompilerParams(
            dimension_semantics=("parallel",),
            vmem_limit_bytes=48 * 1024 * 1024,
        ),
    )(x2d)

    out_shape = orig_shape[:-1] + (k,)
    vals = vals[:m, :k].reshape(out_shape)
    idxs = idxs[:m, :k].reshape(out_shape)
    return vals, idxs


if __name__ == "__main__":
    key = jax.random.PRNGKey(0)
    k = 4

    # shape implied by the module's typical use: (batch, seq, hidden)
    x = jax.random.normal(key, (2, 8, 32), dtype=jnp.float32)
    vals, idxs = straight_through_topk(x, k)
    jax.block_until_ready((vals, idxs))

    ref_vals, ref_idxs = jax.lax.top_k(x, k)
    assert vals.shape == (2, 8, k) and idxs.shape == (2, 8, k)
    assert jnp.allclose(vals, ref_vals)
    assert jnp.array_equal(idxs, ref_idxs.astype(jnp.int32))

    # ragged leading-dim product (exercises row padding / remainder handling)
    x2 = jax.random.normal(jax.random.PRNGKey(1), (3, 5, 40), dtype=jnp.float32)
    vals2, idxs2 = straight_through_topk(x2, 3)
    jax.block_until_ready((vals2, idxs2))
    rv2, ri2 = jax.lax.top_k(x2, 3)
    assert jnp.allclose(vals2, rv2)
    assert jnp.array_equal(idxs2, ri2.astype(jnp.int32))

    # bf16 path (exact ordering via f32 upcast; 16-row sublane multiple)
    x3 = jax.random.normal(jax.random.PRNGKey(2), (4, 8, 64)).astype(jnp.bfloat16)
    vals3, idxs3 = straight_through_topk(x3, 5)
    jax.block_until_ready((vals3, idxs3))
    rv3, ri3 = jax.lax.top_k(x3, 5)
    assert jnp.array_equal(vals3, rv3)
    assert jnp.array_equal(idxs3, ri3.astype(jnp.int32))

    print("KERNEL_OK")
</pallas_src>

<mosaic_0001>
module attributes {stable_mosaic.version = 11 : i64} {
  func.func @_topk_kernel(%arg0: i32, %arg1: memref<8x32xf32, #tpu.memory_space<vmem>>, %arg2: memref<8x128xf32, #tpu.memory_space<vmem>>, %arg3: memref<8x128xi32, #tpu.memory_space<vmem>>) attributes {dimension_semantics = [#tpu.dimension_semantics<parallel>], iteration_bounds = array<i64: 2>, scalar_prefetch = 0 : i64, scratch_operands = 0 : i64, tpu.core_type = #tpu.core_type<tc>, window_params = [{transform_indices = @transform_0, window_bounds = array<i64: 8, 32>}, {transform_indices = @transform_1, window_bounds = array<i64: 8, 128>}, {transform_indices = @transform_2, window_bounds = array<i64: 8, 128>}]} {
    %c0 = arith.constant 0 : index
    %c0_0 = arith.constant 0 : index
    %0 = vector.load %arg1[%c0, %c0_0] : memref<8x32xf32, #tpu.memory_space<vmem>>, vector<8x32xf32>
    %1 = tpu.bitcast %0 : vector<8x32xf32> -> vector<8x32xi32>
    %c0_i32 = arith.constant 0 : i32
    %2 = vector.broadcast %c0_i32 : i32 to vector<8x32xi32>
    %3 = arith.cmpi sge, %1, %2 : vector<8x32xi32>
    %c2147483647_i32 = arith.constant 2147483647 : i32
    %4 = vector.broadcast %c2147483647_i32 : i32 to vector<8x32xi32>
    %5 = arith.xori %1, %4 : vector<8x32xi32>
    %6 = arith.select %3, %1, %5 : vector<8x32xi1>, vector<8x32xi32>
    %7 = arith.cmpf one, %0, %0 : vector<8x32xf32>
    %c2147483647_i32_1 = arith.constant 2147483647 : i32
    %8 = vector.broadcast %c2147483647_i32_1 : i32 to vector<8x32xi32>
    %9 = arith.select %7, %8, %6 : vector<8x32xi1>, vector<8x32xi32>
    %10 = tpu.iota {dimensions = array<i32: 1>} : vector<8x32xi32>
    %cst = arith.constant dense<-2147483648> : vector<8xi32>
    %11 = vector.multi_reduction <maxsi>, %9, %cst [1] : vector<8x32xi32> to vector<8xi32>
    %12 = vector.shape_cast %11 : vector<8xi32> to vector<8x1xi32>
    %13 = vector.broadcast %12 : vector<8x1xi32> to vector<8x32xi32>
    %14 = arith.cmpi eq, %9, %13 : vector<8x32xi32>
    %c32_i32 = arith.constant 32 : i32
    %15 = vector.broadcast %c32_i32 : i32 to vector<8x32xi32>
    %16 = arith.select %14, %10, %15 : vector<8x32xi1>, vector<8x32xi32>
    %cst_2 = arith.constant dense<2147483647> : vector<8xi32>
    %17 = vector.multi_reduction <minsi>, %16, %cst_2 [1] : vector<8x32xi32> to vector<8xi32>
    %18 = vector.shape_cast %17 : vector<8xi32> to vector<8x1xi32>
    %19 = vector.broadcast %18 : vector<8x1xi32> to vector<8x32xi32>
    %20 = arith.cmpi eq, %16, %19 : vector<8x32xi32>
    %c-2147483648_i32 = arith.constant -2147483648 : i32
    %21 = vector.broadcast %c-2147483648_i32 : i32 to vector<8x32xi32>
    %22 = arith.select %20, %21, %9 : vector<8x32xi1>, vector<8x32xi32>
    %cst_3 = arith.constant dense<-2147483648> : vector<8xi32>
    %23 = vector.multi_reduction <maxsi>, %22, %cst_3 [1] : vector<8x32xi32> to vector<8xi32>
    %24 = vector.shape_cast %23 : vector<8xi32> to vector<8x1xi32>
    %25 = vector.broadcast %24 : vector<8x1xi32> to vector<8x32xi32>
    %26 = arith.cmpi eq, %22, %25 : vector<8x32xi32>
    %c32_i32_4 = arith.constant 32 : i32
    %27 = vector.broadcast %c32_i32_4 : i32 to vector<8x32xi32>
    %28 = arith.select %26, %10, %27 : vector<8x32xi1>, vector<8x32xi32>
    %cst_5 = arith.constant dense<2147483647> : vector<8xi32>
    %29 = vector.multi_reduction <minsi>, %28, %cst_5 [1] : vector<8x32xi32> to vector<8xi32>
    %30 = vector.shape_cast %29 : vector<8xi32> to vector<8x1xi32>
    %31 = vector.broadcast %30 : vector<8x1xi32> to vector<8x32xi32>
    %32 = arith.cmpi eq, %28, %31 : vector<8x32xi32>
    %c-2147483648_i32_6 = arith.constant -2147483648 : i32
    %33 = vector.broadcast %c-2147483648_i32_6 : i32 to vector<8x32xi32>
    %34 = arith.select %32, %33, %22 : vector<8x32xi1>, vector<8x32xi32>
    %cst_7 = arith.constant dense<-2147483648> : vector<8xi32>
    %35 = vector.multi_reduction <maxsi>, %34, %cst_7 [1] : vector<8x32xi32> to vector<8xi32>
    %36 = vector.shape_cast %35 : vector<8xi32> to vector<8x1xi32>
    %37 = vector.broadcast %36 : vector<8x1xi32> to vector<8x32xi32>
    %38 = arith.cmpi eq, %34, %37 : vector<8x32xi32>
    %c32_i32_8 = arith.constant 32 : i32
    %39 = vector.broadcast %c32_i32_8 : i32 to vector<8x32xi32>
    %40 = arith.select %38, %10, %39 : vector<8x32xi1>, vector<8x32xi32>
    %cst_9 = arith.constant dense<2147483647> : vector<8xi32>
    %41 = vector.multi_reduction <minsi>, %40, %cst_9 [1] : vector<8x32xi32> to vector<8xi32>
    %42 = vector.shape_cast %41 : vector<8xi32> to vector<8x1xi32>
    %43 = vector.broadcast %42 : vector<8x1xi32> to vector<8x32xi32>
    %44 = arith.cmpi eq, %40, %43 : vector<8x32xi32>
    %c-2147483648_i32_10 = arith.constant -2147483648 : i32
    %45 = vector.broadcast %c-2147483648_i32_10 : i32 to vector<8x32xi32>
    %46 = arith.select %44, %45, %34 : vector<8x32xi1>, vector<8x32xi32>
    %cst_11 = arith.constant dense<-2147483648> : vector<8xi32>
    %47 = vector.multi_reduction <maxsi>, %46, %cst_11 [1] : vector<8x32xi32> to vector<8xi32>
    %48 = vector.shape_cast %47 : vector<8xi32> to vector<8x1xi32>
    %49 = vector.broadcast %48 : vector<8x1xi32> to vector<8x32xi32>
    %50 = arith.cmpi eq, %46, %49 : vector<8x32xi32>
    %c32_i32_12 = arith.constant 32 : i32
    %51 = vector.broadcast %c32_i32_12 : i32 to vector<8x32xi32>
    %52 = arith.select %50, %10, %51 : vector<8x32xi1>, vector<8x32xi32>
    %cst_13 = arith.constant dense<2147483647> : vector<8xi32>
    %53 = vector.multi_reduction <minsi>, %52, %cst_13 [1] : vector<8x32xi32> to vector<8xi32>
    %54 = vector.shape_cast %53 : vector<8xi32> to vector<8x1xi32>
    %c0_i32_14 = arith.constant 0 : i32
    %55 = vector.broadcast %c0_i32_14 : i32 to vector<8x124xi32>
    %c0_i32_15 = arith.constant 0 : i32
    %56 = vector.broadcast %c0_i32_15 : i32 to vector<8x124xi32>
    %57 = tpu.concatenate %12, %24, %36, %48, %55 in 1 : vector<8x1xi32>, vector<8x1xi32>, vector<8x1xi32>, vector<8x1xi32>, vector<8x124xi32> -> vector<8x128xi32>
    %58 = tpu.concatenate %18, %30, %42, %54, %56 in 1 : vector<8x1xi32>, vector<8x1xi32>, vector<8x1xi32>, vector<8x1xi32>, vector<8x124xi32> -> vector<8x128xi32>
    %c0_i32_16 = arith.constant 0 : i32
    %59 = vector.broadcast %c0_i32_16 : i32 to vector<8x128xi32>
    %60 = arith.cmpi sge, %57, %59 : vector<8x128xi32>
    %c2147483647_i32_17 = arith.constant 2147483647 : i32
    %61 = vector.broadcast %c2147483647_i32_17 : i32 to vector<8x128xi32>
    %62 = arith.xori %57, %61 : vector<8x128xi32>
    %63 = arith.select %60, %57, %62 : vector<8x128xi1>, vector<8x128xi32>
    %64 = tpu.bitcast %63 : vector<8x128xi32> -> vector<8x128xf32>
    %c0_18 = arith.constant 0 : index
    %c0_19 = arith.constant 0 : index
    %65 = vector.load %arg2[%c0_18, %c0_19] : memref<8x128xf32, #tpu.memory_space<vmem>>, vector<8x128xf32>
    tpu.vector_store %arg2[%c0_18, %c0_19], %64 {strides = array<i32>} : memref<8x128xf32, #tpu.memory_space<vmem>>, vector<8x128xf32>,
    %c0_20 = arith.constant 0 : index
    %c0_21 = arith.constant 0 : index
    %66 = vector.load %arg3[%c0_20, %c0_21] : memref<8x128xi32, #tpu.memory_space<vmem>>, vector<8x128xi32>
    tpu.vector_store %arg3[%c0_20, %c0_21], %58 {strides = array<i32>} : memref<8x128xi32, #tpu.memory_space<vmem>>, vector<8x128xi32>,
    return
  }
  func.func @transform_0(%arg0: i32) -> (i32, i32) {
    %c0_i32 = arith.constant 0 : i32
    %c0_i32_0 = arith.constant 0 : i32
    return %arg0, %c0_i32 : i32, i32
  }
  func.func @transform_1(%arg0: i32) -> (i32, i32) {
    %c0_i32 = arith.constant 0 : i32
    %c0_i32_0 = arith.constant 0 : i32
    return %arg0, %c0_i32 : i32, i32
  }
  func.func @transform_2(%arg0: i32) -> (i32, i32) {
    %c0_i32 = arith.constant 0 : i32
    %c0_i32_0 = arith.constant 0 : i32
    return %arg0, %c0_i32 : i32, i32
  }
}

</mosaic_0001>

<llo_original>
// kernel: tpu_custom_call.1
$region0: #{tpu_custom_call.1}
  #allocation0 [shape = 'u32[]', space=smem, size = 0x4, offset = 0x4, fixed_abs, tag = 'smem constant byte address 0x4 - core index']
  #allocation1 [shape = 'u32[144,128]{1,0:T(1,128)}', space=vmem, size = 0x12000, scoped, tag = 'internal scratch']
  %s0 = inlined_call_operand.hbm [shape: f32[16,32], index: 0, kind: input, shape index: {}]
  %s1 = inlined_call_operand.hbm [shape: f32[16,128], index: 1, kind: output, shape index: {0}]
  %s2 = inlined_call_operand.hbm [shape: s32[16,128], index: 2, kind: output, shape index: {1}]
  %3 = xla_tuple %s1, %s2
  %s4 = sld [smem:[#allocation0]]
  $region49: #{tpu_custom_call.1} parent=0
    _
  %s6 = ssub.s32 1, %s4
  %s7 = scalar_select 0, %s6, %s4
  $region1: #{tpu_custom_call.1} parent=0
    #allocation2 [shape = 'u8[8192]{0}', space=vmem, size = 0x2000, scoped, tag = 'input window, operand 0']
    #allocation3 [shape = 's32[2]{0}', space=sflag, size = 0x8, scoped, tag = 'scoped memory for tpu_custom_call.1']
    #allocation4 [shape = 's32[2]{0}', space=sflag, size = 0x8, scoped, tag = 'scoped memory for tpu_custom_call.1']
    #allocation5 [shape = 'u8[8192]{0}', space=vmem, size = 0x2000, scoped, tag = 'output window, operand 0']
    #allocation6 [shape = 'u8[8192]{0}', space=vmem, size = 0x2000, scoped, tag = 'output window, operand 1']
    #allocation7 [shape = 's32[2]{0}', space=sflag, size = 0x8, scoped, tag = 'scoped memory for tpu_custom_call.1']
    %8 = vsyncpa [#allocation3], 0
    %s9 = scalar_lea.sflag [#allocation3], 1
    %10 = vsyncpa %s9, 0
    %11 = vsyncpa [#allocation4], 0
    %s12 = scalar_lea.sflag [#allocation4], 1
    %13 = vsyncpa %s12, 0
    %14 = vsyncpa [#allocation7], 0
    %s15 = scalar_lea.sflag [#allocation7], 1
    %16 = vsyncpa %s15, 0
    loop: start=0, step=1, limit=4
    $region2: #{tpu_custom_call.1} parent=1 // loop_pre_header
      _
    $region3: #{tpu_custom_call.1} parent=1 // loop_header
      %s18 = sphi 0, %s22
      %p19 = scmp.ge.s32.totalorder %s18, 4
      %s28 = sphi 0, %s30
      %s31 = sphi 0, %s28
      %s32 = sphi 0, %s31
      %s48 = sphi 0, %s32
      %s54 = sphi 0, %s56
      %s57 = sphi 0, %s54
      %s58 = sphi 0, %s57
      %s74 = sphi 0, %s58
      %s80 = sphi 0, %s82
      %s83 = sphi 0, %s80
      %s84 = sphi 0, %s83
      %s100 = sphi 0, %s84
    $region4: #{tpu_custom_call.1} parent=1 // loop_header_branch
      %21 = sbr.rel (%p19) target = $region8
    $region5: #{tpu_custom_call.1} parent=1 // loop_body
      %s23 = ssub.s32 %s18, 1
      %s24 = ssub.s32 %s18, 2
      %s25 = sadd.s32 %s18, 1
      %s26 = ssub.s32 %s18, %s25
      %p27 = scmp.eq.s32.totalorder %s26, 0
      %s29 = sadd.s32 %s28, 1
      %s30 = scalar_select %p27, %s28, %s29
      %p33 = pneg %p27
      %p34 = scmp.eq.s32.totalorder %s18, 1
      %p35 = por %p33, %p34
      %p36 = scmp.ne.s32.totalorder %s28, %s31
      %p37 = scmp.eq.s32.totalorder %s18, 0
      %p38 = por %p36, %p37
      %p39 = scmp.ne.s32.totalorder %s28, %s31
      %p40 = scmp.eq.s32.totalorder %s23, 1
      %p41 = por %p39, %p40
      %p42 = scmp.ne.s32.totalorder %s31, %s32
      %p43 = scmp.eq.s32.totalorder %s23, 0
      %p44 = por %p42, %p43
      %p45 = scmp.ne.s32.totalorder %s31, %s32
      %p46 = scmp.eq.s32.totalorder %s24, 1
      %p47 = por %p45, %p46
      %p49 = scmp.ne.s32.totalorder %s32, %s48
      %p50 = scmp.eq.s32.totalorder %s24, 0
      %p51 = por %p49, %p50
      %s52 = ssub.s32 %s18, %s25
      %p53 = scmp.eq.s32.totalorder %s52, 0
      %s55 = sadd.s32 %s54, 1
      %s56 = scalar_select %p53, %s54, %s55
      %p59 = pneg %p53
      %p60 = scmp.eq.s32.totalorder %s18, 1
      %p61 = por %p59, %p60
      %p62 = scmp.ne.s32.totalorder %s54, %s57
      %p63 = scmp.eq.s32.totalorder %s18, 0
      %p64 = por %p62, %p63
      %p65 = scmp.ne.s32.totalorder %s54, %s57
      %p66 = scmp.eq.s32.totalorder %s23, 1
      %p67 = por %p65, %p66
      %p68 = scmp.ne.s32.totalorder %s57, %s58
      %p69 = scmp.eq.s32.totalorder %s23, 0
      %p70 = por %p68, %p69
      %p71 = scmp.ne.s32.totalorder %s57, %s58
      %p72 = scmp.eq.s32.totalorder %s24, 1
      %p73 = por %p71, %p72
      %p75 = scmp.ne.s32.totalorder %s58, %s74
      %p76 = scmp.eq.s32.totalorder %s24, 0
      %p77 = por %p75, %p76
      %s78 = ssub.s32 %s18, %s25
      %p79 = scmp.eq.s32.totalorder %s78, 0
      %s81 = sadd.s32 %s80, 1
      %s82 = scalar_select %p79, %s80, %s81
      %p85 = pneg %p79
      %p86 = scmp.eq.s32.totalorder %s18, 1
      %p87 = por %p85, %p86
      %p88 = scmp.ne.s32.totalorder %s80, %s83
      %p89 = scmp.eq.s32.totalorder %s18, 0
      %p90 = por %p88, %p89
      %p91 = scmp.ne.s32.totalorder %s80, %s83
      %p92 = scmp.eq.s32.totalorder %s23, 1
      %p93 = por %p91, %p92
      %p94 = scmp.ne.s32.totalorder %s83, %s84
      %p95 = scmp.eq.s32.totalorder %s23, 0
      %p96 = por %p94, %p95
      %p97 = scmp.ne.s32.totalorder %s83, %s84
      %p98 = scmp.eq.s32.totalorder %s24, 1
      %p99 = por %p97, %p98
      %p101 = scmp.ne.s32.totalorder %s84, %s100
      %p102 = scmp.eq.s32.totalorder %s24, 0
      %p103 = por %p101, %p102
      %p104 = scmp.le.s32.totalorder 1, %s18
      %p105 = scmp.lt.s32.totalorder %s18, 3
      %p106 = pnand %p104, %p105
      %p107 = pneg %p106
      // Predicated region
      $region9: #{tpu_custom_call.1} parent=5 // pred_check
        _
      $region10: #{tpu_custom_call.1} parent=5 // pred_check_branch
        %109 = sbr.rel (%p106) target = $region12
      $region11: #{tpu_custom_call.1} parent=5 // pred_region
        %s110 = ssub.s32 %s18, 1
      $region12: #{tpu_custom_call.1} parent=5 // pred_fallthru
        _
      %p111 = scmp.lt.s32.totalorder %s18, 2
      // Predicated region
      $region13: #{tpu_custom_call.1} parent=5 // pred_check
        %p112 = pneg %p111
      $region14: #{tpu_custom_call.1} parent=5 // pred_check_branch
        %114 = sbr.rel (%p112) target = $region16
      $region15: #{tpu_custom_call.1} parent=5 // pred_region
        // Predicated region
        $region17: #{tpu_custom_call.1} parent=15 // pred_check
          %p115 = pneg %p38
        $region18: #{tpu_custom_call.1} parent=15 // pred_check_branch
          %117 = sbr.rel (%p115) target = $region20
        $region19: #{tpu_custom_call.1} parent=15 // pred_region
          %s118 = sand.u32 %s28, 1
          %s119 = scalar_lea.sflag [#allocation3], %s118
          %s120 = sand.u32 %s28, 1
          %s121 = smul.addr %s120, 8
          %s122 = scalar_lea.vmem [#allocation2], %s121
          %s124 = ssub.s32 128, 128
          %125 = vsyncadd %s119, %s124
          %s126 = smul.addr %s18, 128
          %s127 = scalar_lea.hbm %s0, %s126
          %s129 = sshll.u32 %s122, 4
          %s130 = int_to_ptr.vmem [resolvable:$true] %s129
          %132 = dma.hbm_to_vmem [thread:$0]  %s127, 128, %s130, %s119
        $region20: #{tpu_custom_call.1} parent=15 // pred_fallthru
          _
      $region16: #{tpu_custom_call.1} parent=5 // pred_fallthru
        _
      %p133 = scmp.le.s32.totalorder 1, %s18
      %p134 = scmp.lt.s32.totalorder %s18, 3
      %p135 = pnand %p133, %p134
      %p136 = pneg %p135
      // Predicated region
      $region21: #{tpu_custom_call.1} parent=5 // pred_check
        _
      $region22: #{tpu_custom_call.1} parent=5 // pred_check_branch
        %138 = sbr.rel (%p135) target = $region24
      $region23: #{tpu_custom_call.1} parent=5 // pred_region
        %s139 = ssub.s32 %s18, 1
        %s140 = sand.u32 %s31, 1
        %s141 = scalar_lea.sflag [#allocation3], %s140
        %s142 = sand.u32 %s31, 1
        %s143 = smul.addr %s142, 8
        %s144 = scalar_lea.vmem [#allocation2], %s143
        // Predicated region
        $region25: #{tpu_custom_call.1} parent=23 // pred_check
          %p145 = pneg %p44
        $region26: #{tpu_custom_call.1} parent=23 // pred_check_branch
          %147 = sbr.rel (%p145) target = $region28
        $region27: #{tpu_custom_call.1} parent=23 // pred_region
          %148 = dma.done %s141, 128
        $region28: #{tpu_custom_call.1} parent=23 // pred_fallthru
          _
        %s149 = sand.u32 %s31, 1
        %s150 = scalar_lea.sflag [#allocation3], %s149
        %s151 = sand.u32 %s31, 1
        %s152 = smul.addr %s151, 8
        %s153 = scalar_lea.vmem [#allocation2], %s152
        %p154 = pneg %p44
        %p155 = pneg %p41
        %p156 = pneg %p70
        %p157 = pneg %p67
        %s158 = sand.u32 %s57, 1
        %s159 = scalar_lea.sflag [#allocation4], %s158
        %s160 = sand.u32 %s57, 1
        %s161 = smul.addr %s160, 8
        %s162 = scalar_lea.vmem [#allocation5], %s161
        %p163 = pneg %p96
        %p164 = pneg %p93
        %s165 = sand.u32 %s83, 1
        %s166 = scalar_lea.sflag [#allocation7], %s165
        %s167 = sand.u32 %s83, 1
        %s168 = smul.addr %s167, 8
        %s169 = scalar_lea.vmem [#allocation6], %s168
        %v170 = vld [vmem:[%s144] sm:$0xff]
        %vm172 = vcmp.ge.s32.totalorder %v170, 0
        %v173 = vxor.u32 %v170, 2147483647
        %v174 = vsel %vm172, %v170, %v173
        %vm175 = vcmp.ne.f32.partialorder %v170, %v170
        %v176 = vsel %vm175, 2147483647, %v174
        %v177 = vlaneseq
        %v178 = vand.u32 %v177, 127
        %vm179 = vcmask 261120
        %v180 = vsel %vm179, %v176, 2147483648
        %v181 = vand.u32 %v180, 65535
        %v182 = vshra.s32 %v180, 16
        %v183 = vcvt.s32.f32 %v181
        %v184 = vcvt.s32.f32 %v182
        %185 = vmax.xlane.f32.xlu0 %v184
        %v186 = vpop.xlane.xlu0 %185
        %vm187 = vcmp.eq.f32.partialorder %v184, %v186
        %v188 = vsel %vm187, %v183, -inf
        %189 = vmax.xlane.f32.xlu0 %v188
        %v190 = vpop.xlane.xlu0 %189
        %v191 = vcvt.f32.s32 %v190
        %v192 = vcvt.f32.s32 %v186
        %v193 = vshll.u32 %v192, 16
        %v194 = vadd.s32 %v193, %v191
        %vm195 = vcmp.eq.s32.totalorder %v176, %v194
        %v196 = vsel %vm195, %v178, 32
        %v197 = vsel %vm179, %v196, 2147483647
        %v198 = vand.u32 %v197, 65535
        %v199 = vshra.s32 %v197, 16
        %v200 = vcvt.s32.f32 %v198
        %v201 = vcvt.s32.f32 %v199
        %202 = vmin.xlane.f32.xlu0 %v201
        %v203 = vpop.xlane.xlu0 %202
        %vm204 = vcmp.eq.f32.partialorder %v201, %v203
        %v205 = vsel %vm204, %v200, inf
        %206 = vmin.xlane.f32.xlu0 %v205
        %v207 = vpop.xlane.xlu0 %206
        %v208 = vcvt.f32.s32 %v207
        %v209 = vcvt.f32.s32 %v203
        %v210 = vshll.u32 %v209, 16
        %v211 = vadd.s32 %v210, %v208
        %vm212 = vcmp.eq.s32.totalorder %v196, %v211
        %v213 = vsel %vm212, 2147483648, %v176
        %v214 = vsel %vm179, %v213, 2147483648
        %v215 = vand.u32 %v214, 65535
        %v216 = vshra.s32 %v214, 16
        %v217 = vcvt.s32.f32 %v215
        %v218 = vcvt.s32.f32 %v216
        %219 = vmax.xlane.f32.xlu0 %v218
        %v220 = vpop.xlane.xlu0 %219
        %vm221 = vcmp.eq.f32.partialorder %v218, %v220
        %v222 = vsel %vm221, %v217, -inf
        %223 = vmax.xlane.f32.xlu0 %v222
        %v224 = vpop.xlane.xlu0 %223
        %v225 = vcvt.f32.s32 %v224
        %v226 = vcvt.f32.s32 %v220
        %v227 = vshll.u32 %v226, 16
        %v228 = vadd.s32 %v227, %v225
        %vm229 = vcmp.eq.s32.totalorder %v213, %v228
        %v230 = vsel %vm229, %v178, 32
        %v231 = vsel %vm179, %v230, 2147483647
        %v232 = vand.u32 %v231, 65535
        %v233 = vshra.s32 %v231, 16
        %v234 = vcvt.s32.f32 %v232
        %v235 = vcvt.s32.f32 %v233
        %236 = vmin.xlane.f32.xlu0 %v235
        %v237 = vpop.xlane.xlu0 %236
        %vm238 = vcmp.eq.f32.partialorder %v235, %v237
        %v239 = vsel %vm238, %v234, inf
        %240 = vmin.xlane.f32.xlu0 %v239
        %v241 = vpop.xlane.xlu0 %240
        %v242 = vcvt.f32.s32 %v241
        %v243 = vcvt.f32.s32 %v237
        %v244 = vshll.u32 %v243, 16
        %v245 = vadd.s32 %v244, %v242
        %vm246 = vcmp.eq.s32.totalorder %v230, %v245
        %v247 = vsel %vm246, 2147483648, %v213
        %v248 = vsel %vm179, %v247, 2147483648
        %v249 = vand.u32 %v248, 65535
        %v250 = vshra.s32 %v248, 16
        %v251 = vcvt.s32.f32 %v249
        %v252 = vcvt.s32.f32 %v250
        %253 = vmax.xlane.f32.xlu0 %v252
        %v254 = vpop.xlane.xlu0 %253
        %vm255 = vcmp.eq.f32.partialorder %v252, %v254
        %v256 = vsel %vm255, %v251, -inf
        %257 = vmax.xlane.f32.xlu0 %v256
        %v258 = vpop.xlane.xlu0 %257
        %v259 = vcvt.f32.s32 %v258
        %v260 = vcvt.f32.s32 %v254
        %v261 = vshll.u32 %v260, 16
        %v262 = vadd.s32 %v261, %v259
        %vm263 = vcmp.eq.s32.totalorder %v247, %v262
        %v264 = vsel %vm263, %v178, 32
        %v265 = vsel %vm179, %v264, 2147483647
        %v266 = vand.u32 %v265, 65535
        %v267 = vshra.s32 %v265, 16
        %v268 = vcvt.s32.f32 %v266
        %v269 = vcvt.s32.f32 %v267
        %270 = vmin.xlane.f32.xlu0 %v269
        %v271 = vpop.xlane.xlu0 %270
        %vm272 = vcmp.eq.f32.partialorder %v269, %v271
        %v273 = vsel %vm272, %v268, inf
        %274 = vmin.xlane.f32.xlu0 %v273
        %v275 = vpop.xlane.xlu0 %274
        %v276 = vcvt.f32.s32 %v275
        %v277 = vcvt.f32.s32 %v271
        %v278 = vshll.u32 %v277, 16
        %v279 = vadd.s32 %v278, %v276
        %vm280 = vcmp.eq.s32.totalorder %v264, %v279
        %v281 = vsel %vm280, 2147483648, %v247
        %v282 = vsel %vm179, %v281, 2147483648
        %v283 = vand.u32 %v282, 65535
        %v284 = vshra.s32 %v282, 16
        %v285 = vcvt.s32.f32 %v283
        %v286 = vcvt.s32.f32 %v284
        %287 = vmax.xlane.f32.xlu0 %v286
        %v288 = vpop.xlane.xlu0 %287
        %vm289 = vcmp.eq.f32.partialorder %v286, %v288
        %v290 = vsel %vm289, %v285, -inf
        %291 = vmax.xlane.f32.xlu0 %v290
        %v292 = vpop.xlane.xlu0 %291
        %v293 = vcvt.f32.s32 %v292
        %v294 = vcvt.f32.s32 %v288
        %v295 = vshll.u32 %v294, 16
        %v296 = vadd.s32 %v295, %v293
        %vm297 = vcmp.eq.s32.totalorder %v281, %v296
        %v298 = vsel %vm297, %v178, 32
        %v299 = vsel %vm179, %v298, 2147483647
        %v300 = vand.u32 %v299, 65535
        %v301 = vshra.s32 %v299, 16
        %v302 = vcvt.s32.f32 %v300
        %v303 = vcvt.s32.f32 %v301
        %304 = vmin.xlane.f32.xlu0 %v303
        %v305 = vpop.xlane.xlu0 %304
        %vm306 = vcmp.eq.f32.partialorder %v303, %v305
        %v307 = vsel %vm306, %v302, inf
        %308 = vmin.xlane.f32.xlu0 %v307
        %v309 = vpop.xlane.xlu0 %308
        %v310 = vcvt.f32.s32 %v309
        %v311 = vcvt.f32.s32 %v305
        %v312 = vshll.u32 %v311, 16
        %v313 = vadd.s32 %v312, %v310
        %vm314 = vcmask 7168
        %v315 = vsel %vm314, %v194, %v228
        %vm316 = vcmask 15360
        %v317 = vsel %vm316, %v315, %v262
        %vm318 = vcmask 23552
        %v319 = vsel %vm318, %v317, %v296
        %vm320 = vcmask 31744
        %v321 = vsel %vm320, %v319, 0
        %v322 = vsel %vm314, %v211, %v245
        %v323 = vsel %vm316, %v322, %v279
        %v324 = vsel %vm318, %v323, %v313
        %v325 = vsel %vm320, %v324, 0
        %vm326 = vcmp.ge.s32.totalorder %v321, 0
        %v327 = vxor.u32 %v321, 2147483647
        %v328 = vsel %vm326, %v321, %v327
        %330 = vst [vmem:[%s162] sm:$0xff] %v328
        %331 = vst [vmem:[%s169] sm:$0xff] %v325
        %s332 = sand.u32 %s57, 1
        %s333 = scalar_lea.sflag [#allocation4], %s332
        %s334 = sand.u32 %s57, 1
        %s335 = smul.addr %s334, 8
        %s336 = scalar_lea.vmem [#allocation5], %s335
        %s337 = sand.u32 %s83, 1
        %s338 = scalar_lea.sflag [#allocation7], %s337
        %s339 = sand.u32 %s83, 1
        %s340 = smul.addr %s339, 8
        %s341 = scalar_lea.vmem [#allocation6], %s340
        // Predicated region
        $region29: #{tpu_custom_call.1} parent=23 // pred_check
          %p342 = pneg %p67
        $region30: #{tpu_custom_call.1} parent=23 // pred_check_branch
          %344 = sbr.rel (%p342) target = $region32
        $region31: #{tpu_custom_call.1} parent=23 // pred_region
          %s346 = ssub.s32 128, 128
          %347 = vsyncadd %s333, %s346
          %s348 = smul.addr %s23, 128
          %s349 = scalar_lea.hbm %s1, %s348
          %s351 = sshll.u32 %s336, 4
          %s352 = int_to_ptr.vmem [resolvable:$true] %s351
          %354 = dma.vmem_to_hbm [thread:$0]  %s352, 128, %s349, %s333
        $region32: #{tpu_custom_call.1} parent=23 // pred_fallthru
          _
        // Predicated region
        $region33: #{tpu_custom_call.1} parent=23 // pred_check
          %p355 = pneg %p93
        $region34: #{tpu_custom_call.1} parent=23 // pred_check_branch
          %357 = sbr.rel (%p355) target = $region36
        $region35: #{tpu_custom_call.1} parent=23 // pred_region
          %s359 = ssub.s32 128, 128
          %360 = vsyncadd %s338, %s359
          %s361 = smul.addr %s23, 128
          %s362 = scalar_lea.hbm %s2, %s361
          %s364 = sshll.u32 %s341, 4
          %s365 = int_to_ptr.vmem [resolvable:$true] %s364
          %367 = dma.vmem_to_hbm [thread:$0]  %s365, 128, %s362, %s338
        $region36: #{tpu_custom_call.1} parent=23 // pred_fallthru
          _
      $region24: #{tpu_custom_call.1} parent=5 // pred_fallthru
        _
      %p368 = scmp.le.s32.totalorder 2, %s18
      // Predicated region
      $region37: #{tpu_custom_call.1} parent=5 // pred_check
        %p369 = pneg %p368
      $region38: #{tpu_custom_call.1} parent=5 // pred_check_branch
        %371 = sbr.rel (%p369) target = $region40
      $region39: #{tpu_custom_call.1} parent=5 // pred_region
        %s372 = ssub.s32 %s18, 2
        // Predicated region
        $region41: #{tpu_custom_call.1} parent=39 // pred_check
          %p373 = pneg %p73
        $region42: #{tpu_custom_call.1} parent=39 // pred_check_branch
          %375 = sbr.rel (%p373) target = $region44
        $region43: #{tpu_custom_call.1} parent=39 // pred_region
          %s376 = sand.u32 %s58, 1
          %s377 = scalar_lea.sflag [#allocation4], %s376
          %s378 = sand.u32 %s58, 1
          %s379 = smul.addr %s378, 8
          %s380 = scalar_lea.vmem [#allocation5], %s379
          %381 = dma.done %s377, 128
        $region44: #{tpu_custom_call.1} parent=39 // pred_fallthru
          _
        // Predicated region
        $region45: #{tpu_custom_call.1} parent=39 // pred_check
          %p382 = pneg %p99
        $region46: #{tpu_custom_call.1} parent=39 // pred_check_branch
          %384 = sbr.rel (%p382) target = $region48
        $region47: #{tpu_custom_call.1} parent=39 // pred_region
          %s385 = sand.u32 %s84, 1
          %s386 = scalar_lea.sflag [#allocation7], %s385
          %s387 = sand.u32 %s84, 1
          %s388 = smul.addr %s387, 8
          %s389 = scalar_lea.vmem [#allocation6], %s388
          %390 = dma.done %s386, 128
        $region48: #{tpu_custom_call.1} parent=39 // pred_fallthru
          _
      $region40: #{tpu_custom_call.1} parent=5 // pred_fallthru
        _
    $region6: #{tpu_custom_call.1} parent=1 // loop_footer
      %s22 = sadd.s32 1, %s18
    $region7: #{tpu_custom_call.1} parent=1 // loop_footer_branch
      %17 = sbr.rel target = $region3
    $region8: #{tpu_custom_call.1} parent=1 // loop_exit
      _
    %391 = vsyncpa [#allocation3], 1
    %s392 = scalar_lea.sflag [#allocation3], 1
    %393 = vsyncpa %s392, 1
    %394 = vsyncpa [#allocation4], 1
    %s395 = scalar_lea.sflag [#allocation4], 1
    %396 = vsyncpa %s395, 1
    %397 = vsyncpa [#allocation7], 1
    %s398 = scalar_lea.sflag [#allocation7], 1
    %399 = vsyncpa %s398, 1

</llo_original>
